<compile_context>
chip_gen: v6e
topology: v6e:2x2x1
jax: 0.10.0
libtpu: 0.0.40
codegen_flags: <defaults>
</compile_context>

<pallas_src>
import functools

import jax
import jax.numpy as jnp
from jax.experimental import pallas as pl
from jax.experimental.pallas import tpu as pltpu

NUM_CLASSES = 22
DICE_WEIGHT = 0.5
SMOOTH = 1e-5
LANE = 128
DEFAULT_TILE_P = 16384
VMEM_LIMIT_BYTES = 32 * 1024 * 1024


def _round_up(x, m):
    return (x + m - 1) // m * m


def _fold_lanes(x, width=LANE):
    """Reduce (R, T) -> (R, width) by tree-adding lane-aligned chunks (VALU only)."""
    t = x.shape[-1]
    parts = [x[:, j * width:(j + 1) * width] for j in range(t // width)]
    while len(parts) > 1:
        nxt = [parts[i] + parts[i + 1] for i in range(0, len(parts) - 1, 2)]
        if len(parts) % 2:
            nxt.append(parts[-1])
        parts = nxt
    return parts[0]


def _loss_kernel(logits_ref, tgt_ref, ce_ref, inter_ref, union_ref,
                 ce_acc, inter_acc, probs_acc, oh_acc,
                 *, valid_pixels, tile_p, needs_mask, tiles_per_chunk, num_tiles):
    t = pl.program_id(2)

    # ---- init per-(batch, chunk) accumulators on the first pixel tile ----
    @pl.when(t == 0)
    def _():
        ce_acc[...] = jnp.zeros_like(ce_acc)
        inter_acc[...] = jnp.zeros_like(inter_acc)
        probs_acc[...] = jnp.zeros_like(probs_acc)
        oh_acc[...] = jnp.zeros_like(oh_acc)

    logits_raw = logits_ref[0].astype(jnp.float32)            # (C, tile_p)
    tgt_raw = tgt_ref[0]                                       # (1, tile_p) int32
    num_c = logits_raw.shape[0]
    # Tiny (C, 1) iota; the == compare broadcasts against the (1, tile_p) targets.
    class_iota = jax.lax.broadcasted_iota(jnp.int32, (num_c, 1), 0)

    def process(logits, tgt, valid_f):
        onehot = (class_iota == tgt).astype(jnp.float32)       # (C, tile_p)
        # softmax over the class (sublane) axis
        m = jnp.max(logits, axis=0, keepdims=True)             # (1, tile_p)
        ex = jnp.exp(logits - m)                               # (C, tile_p)
        sumex = jnp.sum(ex, axis=0, keepdims=True)             # (1, tile_p)
        probs = ex * pl.reciprocal(sumex, approx=False)        # (C, tile_p)
        # cross entropy per pixel: logsumexp - target logit
        lse = m + jnp.log(sumex)                               # (1, tile_p)
        tgt_logit = jnp.sum(logits * onehot, axis=0, keepdims=True)
        ce_term = lse - tgt_logit                              # (1, tile_p)
        if valid_f is not None:
            probs = probs * valid_f
            ce_term = ce_term * valid_f
        # per-tile partial reduction into tiny (·, 128) accumulators
        ce_acc[...] += _fold_lanes(ce_term)
        inter_acc[...] += _fold_lanes(probs * onehot)
        probs_acc[...] += _fold_lanes(probs)
        oh_acc[...] += _fold_lanes(onehot)

    if needs_mask:
        global_tile = pl.program_id(1) * tiles_per_chunk + t
        is_last_tile = global_tile == (num_tiles - 1)

        # Only the final global tile has invalid lanes: zero the logits BEFORE
        # exp (OOB garbage could be NaN/Inf) and neutralize the targets.
        @pl.when(is_last_tile)
        def _():
            lane = jax.lax.broadcasted_iota(jnp.int32, (1, tile_p), 1)
            valid_b = (global_tile * tile_p + lane) < valid_pixels
            logits_m = jnp.where(valid_b, logits_raw, 0.0)
            tgt_m = jnp.where(valid_b, tgt_raw, -1)
            process(logits_m, tgt_m, valid_b.astype(jnp.float32))

        @pl.when(jnp.logical_not(is_last_tile))
        def _():
            process(logits_raw, tgt_raw, None)
    else:
        process(logits_raw, tgt_raw, None)

    # ---- finalize this (batch, chunk): one cross-lane reduction ----
    @pl.when(t == pl.num_programs(2) - 1)
    def _():
        ce_ref[0, 0] = jnp.sum(ce_acc[...], axis=-1, keepdims=True)             # (1, 1)
        inter_ref[0, 0] = jnp.sum(inter_acc[...], axis=-1, keepdims=True)       # (C, 1)
        union_ref[0, 0] = jnp.sum(probs_acc[...] + oh_acc[...], axis=-1,
                                  keepdims=True)                                # (C, 1)


def dice_cross_entropy_loss(inputs_nchw, targets_n1hw,
                            num_classes=NUM_CLASSES,
                            dice_weight=DICE_WEIGHT,
                            tile_p=DEFAULT_TILE_P):
    N, C, H, W = inputs_nchw.shape
    assert C == num_classes
    P = H * W

    # Native layout: just collapse H*W -> pixels on the lane axis (no pad pass).
    logits = inputs_nchw.reshape(N, C, P)          # bf16 inputs are fine; upcast in-kernel
    targets = targets_n1hw.reshape(N, 1, P).astype(jnp.int32)

    tile_p = max(LANE, min(int(tile_p), _round_up(P, LANE)))
    tile_p = _round_up(tile_p, LANE)
    num_tiles = pl.cdiv(P, tile_p)
    needs_mask = (P % tile_p) != 0

    # Split the pixel axis into 2 megacore-shardable chunks when it divides evenly.
    n_chunks = 2 if (num_tiles >= 2 and num_tiles % 2 == 0) else 1
    tiles_per_chunk = num_tiles // n_chunks

    kernel = functools.partial(
        _loss_kernel,
        valid_pixels=P,
        tile_p=tile_p,
        needs_mask=needs_mask,
        tiles_per_chunk=tiles_per_chunk,
        num_tiles=num_tiles,
    )

    cost = pl.CostEstimate(
        flops=int(10 * N * P * C),
        transcendentals=int(N * P * (C + 1)),
        bytes_accessed=int(N * C * P * logits.dtype.itemsize
                           + N * P * targets.dtype.itemsize
                           + N * n_chunks * (2 * C + 1) * 4),
    )

    ce_sum, inter, union = pl.pallas_call(
        kernel,
        out_shape=(
            jax.ShapeDtypeStruct((N, n_chunks, 1, 1), jnp.float32),
            jax.ShapeDtypeStruct((N, n_chunks, C, 1), jnp.float32),
            jax.ShapeDtypeStruct((N, n_chunks, C, 1), jnp.float32),
        ),
        grid_spec=pltpu.PrefetchScalarGridSpec(
            num_scalar_prefetch=0,
            grid=(N, n_chunks, tiles_per_chunk),
            in_specs=[
                pl.BlockSpec((1, C, tile_p),
                             lambda n, c, t: (n, 0, c * tiles_per_chunk + t)),
                pl.BlockSpec((1, 1, tile_p),
                             lambda n, c, t: (n, 0, c * tiles_per_chunk + t)),
            ],
            out_specs=[
                pl.BlockSpec((1, 1, 1, 1), lambda n, c, t: (n, c, 0, 0)),
                pl.BlockSpec((1, 1, C, 1), lambda n, c, t: (n, c, 0, 0)),
                pl.BlockSpec((1, 1, C, 1), lambda n, c, t: (n, c, 0, 0)),
            ],
            scratch_shapes=[
                pltpu.VMEM((1, LANE), jnp.float32),   # CE partial sums
                pltpu.VMEM((C, LANE), jnp.float32),   # intersection partial sums
                pltpu.VMEM((C, LANE), jnp.float32),   # sum(probs) partial sums
                pltpu.VMEM((C, LANE), jnp.float32),   # sum(onehot) partial sums
            ],
        ),
        compiler_params=pltpu.CompilerParams(
            dimension_semantics=("parallel", "parallel", "arbitrary"),
            vmem_limit_bytes=VMEM_LIMIT_BYTES,
        ),
        cost_estimate=cost,
    )(logits, targets)

    # Tiny final combine on (N, n_chunks, ...) partials — negligible cost in JAX.
    ce_mean = jnp.sum(ce_sum) / jnp.float32(N * P)
    inter_nc = jnp.sum(inter[..., 0], axis=1)          # (N, C)
    union_nc = jnp.sum(union[..., 0], axis=1)          # (N, C)
    dice = (2.0 * inter_nc + SMOOTH) / (union_nc + SMOOTH)
    dice_loss = 1.0 - jnp.mean(dice)
    return (1.0 - dice_weight) * ce_mean + dice_weight * dice_loss


def reference_loss(inputs_nchw, targets_n1hw, dice_weight=DICE_WEIGHT):
    """Pure-JAX reference mirroring the PyTorch module."""
    t = targets_n1hw[:, 0]                                   # (N, H, W)
    logp = jax.nn.log_softmax(inputs_nchw, axis=1)
    ce = -jnp.mean(jnp.take_along_axis(logp, t[:, None], axis=1))
    probs = jax.nn.softmax(inputs_nchw, axis=1)
    oh = jax.nn.one_hot(t, inputs_nchw.shape[1]).transpose(0, 3, 1, 2)
    inter = jnp.sum(probs * oh, axis=(2, 3))
    union = jnp.sum(probs, axis=(2, 3)) + jnp.sum(oh, axis=(2, 3))
    dice = (2.0 * inter + SMOOTH) / (union + SMOOTH)
    dice_loss = 1.0 - jnp.mean(dice)
    return (1.0 - dice_weight) * ce + dice_weight * dice_loss


if __name__ == "__main__":
    key = jax.random.PRNGKey(0)
    k1, k2, k3, k4 = jax.random.split(key, 4)

    N, C = 2, NUM_CLASSES

    # Test 1: divisible pixel count (single tile, lane-fold depth > 1, no mask).
    H, W = 16, 16
    inputs = jax.random.normal(k1, (N, C, H, W), dtype=jnp.float32)
    targets = jax.random.randint(k2, (N, 1, H, W), 0, C, dtype=jnp.int32)
    loss = jax.block_until_ready(dice_cross_entropy_loss(inputs, targets))
    ref = reference_loss(inputs, targets)
    assert jnp.allclose(loss, ref, rtol=1e-5, atol=1e-5), (loss, ref)

    # Test 2: non-divisible pixel count, multi-tile, 2 pixel chunks,
    # in-kernel masking of the partial last block (no host-side pad).
    H2, W2 = 20, 20
    inputs2 = jax.random.normal(k3, (N, C, H2, W2), dtype=jnp.float32)
    targets2 = jax.random.randint(k4, (N, 1, H2, W2), 0, C, dtype=jnp.int32)
    loss2 = jax.block_until_ready(
        dice_cross_entropy_loss(inputs2, targets2, tile_p=128))
    ref2 = reference_loss(inputs2, targets2)
    assert jnp.allclose(loss2, ref2, rtol=1e-5, atol=1e-5), (loss2, ref2)

    print("KERNEL_OK")
</pallas_src>

<mosaic_0001>
module attributes {stable_mosaic.version = 11 : i64} {
  func.func @_loss_kernel(%arg0: i32, %arg1: i32, %arg2: i32, %arg3: memref<1x22x256xf32, #tpu.memory_space<vmem>>, %arg4: memref<1x1x256xi32, #tpu.memory_space<vmem>>, %arg5: memref<1x1x1x1xf32, #tpu.memory_space<vmem>>, %arg6: memref<1x1x22x1xf32, #tpu.memory_space<vmem>>, %arg7: memref<1x1x22x1xf32, #tpu.memory_space<vmem>>, %arg8: memref<1x128xf32, #tpu.memory_space<vmem>>, %arg9: memref<22x128xf32, #tpu.memory_space<vmem>>, %arg10: memref<22x128xf32, #tpu.memory_space<vmem>>, %arg11: memref<22x128xf32, #tpu.memory_space<vmem>>) attributes {dimension_semantics = [#tpu.dimension_semantics<parallel>, #tpu.dimension_semantics<parallel>, #tpu.dimension_semantics<arbitrary>], iteration_bounds = array<i64: 2, 1, 1>, scalar_prefetch = 0 : i64, scratch_operands = 4 : i64, tpu.core_type = #tpu.core_type<tc>, window_params = [{transform_indices = @transform_0, window_bounds = array<i64: 1, 22, 256>}, {transform_indices = @transform_1, window_bounds = array<i64: 1, 1, 256>}, {transform_indices = @transform_2, window_bounds = array<i64: 1, 1, 1, 1>}, {transform_indices = @transform_3, window_bounds = array<i64: 1, 1, 22, 1>}, {transform_indices = @transform_4, window_bounds = array<i64: 1, 1, 22, 1>}]} {
    %c0_i32 = arith.constant 0 : i32
    %0 = arith.cmpi eq, %arg2, %c0_i32 : i32
    %1 = arith.extui %0 : i1 to i32
    %c0_i32_0 = arith.constant 0 : i32
    %2 = arith.cmpi ne, %1, %c0_i32_0 : i32
    scf.if %2 {
      %cst_26 = arith.constant 0.000000e+00 : f32
      %57 = vector.broadcast %cst_26 : f32 to vector<1x128xf32>
      %c0_27 = arith.constant 0 : index
      %c0_28 = arith.constant 0 : index
      %58 = vector.load %arg8[%c0_27, %c0_28] : memref<1x128xf32, #tpu.memory_space<vmem>>, vector<1x128xf32>
      tpu.vector_store %arg8[%c0_27, %c0_28], %57 {strides = array<i32>} : memref<1x128xf32, #tpu.memory_space<vmem>>, vector<1x128xf32>,
      %cst_29 = arith.constant 0.000000e+00 : f32
      %59 = vector.broadcast %cst_29 : f32 to vector<22x128xf32>
      %c0_30 = arith.constant 0 : index
      %c0_31 = arith.constant 0 : index
      %60 = vector.load %arg9[%c0_30, %c0_31] : memref<22x128xf32, #tpu.memory_space<vmem>>, vector<22x128xf32>
      tpu.vector_store %arg9[%c0_30, %c0_31], %59 {strides = array<i32>} : memref<22x128xf32, #tpu.memory_space<vmem>>, vector<22x128xf32>,
      %cst_32 = arith.constant 0.000000e+00 : f32
      %61 = vector.broadcast %cst_32 : f32 to vector<22x128xf32>
      %c0_33 = arith.constant 0 : index
      %c0_34 = arith.constant 0 : index
      %62 = vector.load %arg10[%c0_33, %c0_34] : memref<22x128xf32, #tpu.memory_space<vmem>>, vector<22x128xf32>
      tpu.vector_store %arg10[%c0_33, %c0_34], %61 {strides = array<i32>} : memref<22x128xf32, #tpu.memory_space<vmem>>, vector<22x128xf32>,
      %cst_35 = arith.constant 0.000000e+00 : f32
      %63 = vector.broadcast %cst_35 : f32 to vector<22x128xf32>
      %c0_36 = arith.constant 0 : index
      %c0_37 = arith.constant 0 : index
      %64 = vector.load %arg11[%c0_36, %c0_37] : memref<22x128xf32, #tpu.memory_space<vmem>>, vector<22x128xf32>
      tpu.vector_store %arg11[%c0_36, %c0_37], %63 {strides = array<i32>} : memref<22x128xf32, #tpu.memory_space<vmem>>, vector<22x128xf32>,
    } else {
    }
    %c0 = arith.constant 0 : index
    %c0_1 = arith.constant 0 : index
    %c0_2 = arith.constant 0 : index
    %3 = vector.load %arg3[%c0, %c0_1, %c0_2] : memref<1x22x256xf32, #tpu.memory_space<vmem>>, vector<1x22x256xf32>
    %4 = vector.shape_cast %3 : vector<1x22x256xf32> to vector<22x256xf32>
    %c0_3 = arith.constant 0 : index
    %c0_4 = arith.constant 0 : index
    %c0_5 = arith.constant 0 : index
    %5 = vector.load %arg4[%c0_3, %c0_4, %c0_5] : memref<1x1x256xi32, #tpu.memory_space<vmem>>, vector<1x1x256xi32>
    %6 = vector.shape_cast %5 : vector<1x1x256xi32> to vector<1x256xi32>
    %7 = tpu.iota {dimensions = array<i32: 0>} : vector<22x1xi32>
    %8 = vector.broadcast %7 : vector<22x1xi32> to vector<22x256xi32>
    %9 = vector.broadcast %6 : vector<1x256xi32> to vector<22x256xi32>
    %10 = arith.cmpi eq, %8, %9 : vector<22x256xi32>
    %11 = arith.extui %10 : vector<22x256xi1> to vector<22x256xi32>
    %12 = arith.sitofp %11 : vector<22x256xi32> to vector<22x256xf32>
    %cst = arith.constant dense<0xFF800000> : vector<256xf32>
    %13 = vector.multi_reduction <maximumf>, %4, %cst [0] : vector<22x256xf32> to vector<256xf32>
    %14 = vector.shape_cast %13 : vector<256xf32> to vector<1x256xf32>
    %15 = vector.broadcast %14 : vector<1x256xf32> to vector<22x256xf32>
    %16 = arith.subf %4, %15 : vector<22x256xf32>
    %17 = math.exp %16 : vector<22x256xf32>
    %cst_6 = arith.constant dense<0.000000e+00> : vector<256xf32>
    %18 = vector.multi_reduction <add>, %17, %cst_6 [0] : vector<22x256xf32> to vector<256xf32>
    %19 = vector.shape_cast %18 : vector<256xf32> to vector<1x256xf32>
    %20 = tpu.reciprocal %19 : vector<1x256xf32> -> vector<1x256xf32>
    %21 = vector.broadcast %20 : vector<1x256xf32> to vector<22x256xf32>
    %22 = arith.mulf %17, %21 : vector<22x256xf32>
    %23 = math.log %19 : vector<1x256xf32>
    %24 = arith.addf %14, %23 : vector<1x256xf32>
    %25 = arith.mulf %4, %12 : vector<22x256xf32>
    %cst_7 = arith.constant dense<0.000000e+00> : vector<256xf32>
    %26 = vector.multi_reduction <add>, %25, %cst_7 [0] : vector<22x256xf32> to vector<256xf32>
    %27 = vector.shape_cast %26 : vector<256xf32> to vector<1x256xf32>
    %28 = arith.subf %24, %27 : vector<1x256xf32>
    %c0_8 = arith.constant 0 : index
    %c0_9 = arith.constant 0 : index
    %29 = vector.load %arg8[%c0_8, %c0_9] : memref<1x128xf32, #tpu.memory_space<vmem>>, vector<1x128xf32>
    %30 = vector.extract_strided_slice %28 {offsets = [0, 0], sizes = [1, 128], strides = [1, 1]} : vector<1x256xf32> to vector<1x128xf32>
    %31 = vector.extract_strided_slice %28 {offsets = [0, 128], sizes = [1, 128], strides = [1, 1]} : vector<1x256xf32> to vector<1x128xf32>
    %32 = arith.addf %30, %31 : vector<1x128xf32>
    %33 = arith.addf %29, %32 : vector<1x128xf32>
    %c0_10 = arith.constant 0 : index
    %c0_11 = arith.constant 0 : index
    %34 = vector.load %arg8[%c0_10, %c0_11] : memref<1x128xf32, #tpu.memory_space<vmem>>, vector<1x128xf32>
    tpu.vector_store %arg8[%c0_10, %c0_11], %33 {strides = array<i32>} : memref<1x128xf32, #tpu.memory_space<vmem>>, vector<1x128xf32>,
    %c0_12 = arith.constant 0 : index
    %c0_13 = arith.constant 0 : index
    %35 = vector.load %arg9[%c0_12, %c0_13] : memref<22x128xf32, #tpu.memory_space<vmem>>, vector<22x128xf32>
    %36 = arith.mulf %22, %12 : vector<22x256xf32>
    %37 = vector.extract_strided_slice %36 {offsets = [0, 0], sizes = [22, 128], strides = [1, 1]} : vector<22x256xf32> to vector<22x128xf32>
    %38 = vector.extract_strided_slice %36 {offsets = [0, 128], sizes = [22, 128], strides = [1, 1]} : vector<22x256xf32> to vector<22x128xf32>
    %39 = arith.addf %37, %38 : vector<22x128xf32>
    %40 = arith.addf %35, %39 : vector<22x128xf32>
    %c0_14 = arith.constant 0 : index
    %c0_15 = arith.constant 0 : index
    %41 = vector.load %arg9[%c0_14, %c0_15] : memref<22x128xf32, #tpu.memory_space<vmem>>, vector<22x128xf32>
    tpu.vector_store %arg9[%c0_14, %c0_15], %40 {strides = array<i32>} : memref<22x128xf32, #tpu.memory_space<vmem>>, vector<22x128xf32>,
    %c0_16 = arith.constant 0 : index
    %c0_17 = arith.constant 0 : index
    %42 = vector.load %arg10[%c0_16, %c0_17] : memref<22x128xf32, #tpu.memory_space<vmem>>, vector<22x128xf32>
    %43 = vector.extract_strided_slice %22 {offsets = [0, 0], sizes = [22, 128], strides = [1, 1]} : vector<22x256xf32> to vector<22x128xf32>
    %44 = vector.extract_strided_slice %22 {offsets = [0, 128], sizes = [22, 128], strides = [1, 1]} : vector<22x256xf32> to vector<22x128xf32>
    %45 = arith.addf %43, %44 : vector<22x128xf32>
    %46 = arith.addf %42, %45 : vector<22x128xf32>
    %c0_18 = arith.constant 0 : index
    %c0_19 = arith.constant 0 : index
    %47 = vector.load %arg10[%c0_18, %c0_19] : memref<22x128xf32, #tpu.memory_space<vmem>>, vector<22x128xf32>
    tpu.vector_store %arg10[%c0_18, %c0_19], %46 {strides = array<i32>} : memref<22x128xf32, #tpu.memory_space<vmem>>, vector<22x128xf32>,
    %c0_20 = arith.constant 0 : index
    %c0_21 = arith.constant 0 : index
    %48 = vector.load %arg11[%c0_20, %c0_21] : memref<22x128xf32, #tpu.memory_space<vmem>>, vector<22x128xf32>
    %49 = vector.extract_strided_slice %12 {offsets = [0, 0], sizes = [22, 128], strides = [1, 1]} : vector<22x256xf32> to vector<22x128xf32>
    %50 = vector.extract_strided_slice %12 {offsets = [0, 128], sizes = [22, 128], strides = [1, 1]} : vector<22x256xf32> to vector<22x128xf32>
    %51 = arith.addf %49, %50 : vector<22x128xf32>
    %52 = arith.addf %48, %51 : vector<22x128xf32>
    %c0_22 = arith.constant 0 : index
    %c0_23 = arith.constant 0 : index
    %53 = vector.load %arg11[%c0_22, %c0_23] : memref<22x128xf32, #tpu.memory_space<vmem>>, vector<22x128xf32>
    tpu.vector_store %arg11[%c0_22, %c0_23], %52 {strides = array<i32>} : memref<22x128xf32, #tpu.memory_space<vmem>>, vector<22x128xf32>,
    %c0_i32_24 = arith.constant 0 : i32
    %54 = arith.cmpi eq, %arg2, %c0_i32_24 : i32
    %55 = arith.extui %54 : i1 to i32
    %c0_i32_25 = arith.constant 0 : i32
    %56 = arith.cmpi ne, %55, %c0_i32_25 : i32
    scf.if %56 {
      %c0_26 = arith.constant 0 : index
      %c0_27 = arith.constant 0 : index
      %57 = vector.load %arg8[%c0_26, %c0_27] : memref<1x128xf32, #tpu.memory_space<vmem>>, vector<1x128xf32>
      %cst_28 = arith.constant dense<0.000000e+00> : vector<1xf32>
      %58 = vector.multi_reduction <add>, %57, %cst_28 [1] : vector<1x128xf32> to vector<1xf32>
      %59 = vector.shape_cast %58 : vector<1xf32> to vector<1x1xf32>
      %c0_29 = arith.constant 0 : index
      %c0_30 = arith.constant 0 : index
      %c0_31 = arith.constant 0 : index
      %c0_32 = arith.constant 0 : index
      %60 = vector.load %arg5[%c0_29, %c0_30, %c0_31, %c0_32] : memref<1x1x1x1xf32, #tpu.memory_space<vmem>>, vector<1x1x1x1xf32>
      %61 = vector.shape_cast %60 : vector<1x1x1x1xf32> to vector<1x1xf32>
      %62 = vector.shape_cast %59 : vector<1x1xf32> to vector<1x1x1x1xf32>
      tpu.vector_store %arg5[%c0_29, %c0_30, %c0_31, %c0_32], %62 {strides = array<i32>} : memref<1x1x1x1xf32, #tpu.memory_space<vmem>>, vector<1x1x1x1xf32>,
      %c0_33 = arith.constant 0 : index
      %c0_34 = arith.constant 0 : index
      %63 = vector.load %arg9[%c0_33, %c0_34] : memref<22x128xf32, #tpu.memory_space<vmem>>, vector<22x128xf32>
      %cst_35 = arith.constant dense<0.000000e+00> : vector<22xf32>
      %64 = vector.multi_reduction <add>, %63, %cst_35 [1] : vector<22x128xf32> to vector<22xf32>
      %65 = vector.shape_cast %64 : vector<22xf32> to vector<22x1xf32>
      %c0_36 = arith.constant 0 : index
      %c0_37 = arith.constant 0 : index
      %c0_38 = arith.constant 0 : index
      %c0_39 = arith.constant 0 : index
      %66 = vector.load %arg6[%c0_36, %c0_37, %c0_38, %c0_39] : memref<1x1x22x1xf32, #tpu.memory_space<vmem>>, vector<1x1x22x1xf32>
      %67 = vector.shape_cast %66 : vector<1x1x22x1xf32> to vector<22x1xf32>
      %68 = vector.shape_cast %65 : vector<22x1xf32> to vector<1x1x22x1xf32>
      tpu.vector_store %arg6[%c0_36, %c0_37, %c0_38, %c0_39], %68 {strides = array<i32>} : memref<1x1x22x1xf32, #tpu.memory_space<vmem>>, vector<1x1x22x1xf32>,
      %c0_40 = arith.constant 0 : index
      %c0_41 = arith.constant 0 : index
      %69 = vector.load %arg10[%c0_40, %c0_41] : memref<22x128xf32, #tpu.memory_space<vmem>>, vector<22x128xf32>
      %c0_42 = arith.constant 0 : index
      %c0_43 = arith.constant 0 : index
      %70 = vector.load %arg11[%c0_42, %c0_43] : memref<22x128xf32, #tpu.memory_space<vmem>>, vector<22x128xf32>
      %71 = arith.addf %69, %70 : vector<22x128xf32>
      %cst_44 = arith.constant dense<0.000000e+00> : vector<22xf32>
      %72 = vector.multi_reduction <add>, %71, %cst_44 [1] : vector<22x128xf32> to vector<22xf32>
      %73 = vector.shape_cast %72 : vector<22xf32> to vector<22x1xf32>
      %c0_45 = arith.constant 0 : index
      %c0_46 = arith.constant 0 : index
      %c0_47 = arith.constant 0 : index
      %c0_48 = arith.constant 0 : index
      %74 = vector.load %arg7[%c0_45, %c0_46, %c0_47, %c0_48] : memref<1x1x22x1xf32, #tpu.memory_space<vmem>>, vector<1x1x22x1xf32>
      %75 = vector.shape_cast %74 : vector<1x1x22x1xf32> to vector<22x1xf32>
      %76 = vector.shape_cast %73 : vector<22x1xf32> to vector<1x1x22x1xf32>
      tpu.vector_store %arg7[%c0_45, %c0_46, %c0_47, %c0_48], %76 {strides = array<i32>} : memref<1x1x22x1xf32, #tpu.memory_space<vmem>>, vector<1x1x22x1xf32>,
    } else {
    }
    return
  }
  func.func @transform_0(%arg0: i32, %arg1: i32, %arg2: i32) -> (i32, i32, i32) {
    %c1_i32 = arith.constant 1 : i32
    %0 = arith.muli %arg1, %c1_i32 : i32
    %1 = arith.addi %0, %arg2 : i32
    %c0_i32 = arith.constant 0 : i32
    %c0_i32_0 = arith.constant 0 : i32
    return %arg0, %c0_i32, %1 : i32, i32, i32
  }
  func.func @transform_1(%arg0: i32, %arg1: i32, %arg2: i32) -> (i32, i32, i32) {
    %c1_i32 = arith.constant 1 : i32
    %0 = arith.muli %arg1, %c1_i32 : i32
    %1 = arith.addi %0, %arg2 : i32
    %c0_i32 = arith.constant 0 : i32
    %c0_i32_0 = arith.constant 0 : i32
    return %arg0, %c0_i32, %1 : i32, i32, i32
  }
  func.func @transform_2(%arg0: i32, %arg1: i32, %arg2: i32) -> (i32, i32, i32, i32) {
    %c0_i32 = arith.constant 0 : i32
    %c0_i32_0 = arith.constant 0 : i32
    %c0_i32_1 = arith.constant 0 : i32
    return %arg0, %arg1, %c0_i32, %c0_i32_0 : i32, i32, i32, i32
  }
  func.func @transform_3(%arg0: i32, %arg1: i32, %arg2: i32) -> (i32, i32, i32, i32) {
    %c0_i32 = arith.constant 0 : i32
    %c0_i32_0 = arith.constant 0 : i32
    %c0_i32_1 = arith.constant 0 : i32
    return %arg0, %arg1, %c0_i32, %c0_i32_0 : i32, i32, i32, i32
  }
  func.func @transform_4(%arg0: i32, %arg1: i32, %arg2: i32) -> (i32, i32, i32, i32) {
    %c0_i32 = arith.constant 0 : i32
    %c0_i32_0 = arith.constant 0 : i32
    %c0_i32_1 = arith.constant 0 : i32
    return %arg0, %arg1, %c0_i32, %c0_i32_0 : i32, i32, i32, i32
  }
}

</mosaic_0001>

<llo_original>
// kernel: tpu_custom_call.1
$region0: #{tpu_custom_call.1}
  #allocation0 [shape = 'u32[]', space=smem, size = 0x4, offset = 0x4, fixed_abs, tag = 'smem constant byte address 0x4 - core index']
  #allocation1 [shape = 'u32[144,128]{1,0:T(1,128)}', space=vmem, size = 0x12000, scoped, tag = 'internal scratch']
  #allocation2 [shape = 'f32[1,128]{1,0:T(1,128)}', space=vmem, size = 0x200, scoped, tag = 'scratch operand']
  #allocation3 [shape = 'f32[22,128]{1,0:T(8,128)}', space=vmem, size = 0x3000, scoped, tag = 'scratch operand']
  #allocation4 [shape = 'f32[22,128]{1,0:T(8,128)}', space=vmem, size = 0x3000, scoped, tag = 'scratch operand']
  #allocation5 [shape = 'f32[22,128]{1,0:T(8,128)}', space=vmem, size = 0x3000, scoped, tag = 'scratch operand']
  %s0 = inlined_call_operand.vmem [shape: f32[2,22,256], index: 0, kind: input, shape index: {}]
  %s1 = inlined_call_operand.vmem [shape: s32[2,1,256], index: 1, kind: input, shape index: {}]
  %s2 = inlined_call_operand.vmem [shape: f32[2,1,1,1], index: 2, kind: output, shape index: {0}]
  %s3 = inlined_call_operand.vmem [shape: f32[2,1,22,1], index: 3, kind: output, shape index: {1}]
  %s4 = inlined_call_operand.vmem [shape: f32[2,1,22,1], index: 4, kind: output, shape index: {2}]
  %5 = xla_tuple %s2, %s3, %s4
  %s6 = sld [smem:[#allocation0]]
  $region65: #{tpu_custom_call.1} parent=0
    _
  %s8 = ssub.s32 1, %s6
  %s9 = scalar_select 0, %s8, %s6
  loop: start=0, step=1, limit=4
  $region2: #{tpu_custom_call.1} parent=0 // loop_pre_header
    _
  $region3: #{tpu_custom_call.1} parent=0 // loop_header
    %s11 = sphi 0, %s15
    %p12 = scmp.ge.s32.totalorder %s11, 4
    %s18 = sphi 0, %s37
    %s19 = sphi 0, %s33
    %s20 = sphi 0, %s29
    %s21 = sphi 0, %s18
    %s22 = sphi 0, %s19
    %s23 = sphi 0, %s20
    %s24 = sphi 0, %s21
    %s25 = sphi 0, %s22
    %s26 = sphi 0, %s23
    %s44 = sphi 0, %s46
    %s47 = sphi 0, %s44
    %s48 = sphi 0, %s47
    %s64 = sphi 0, %s48
    %s74 = sphi 0, %s76
    %s77 = sphi 0, %s74
    %s78 = sphi 0, %s77
    %s94 = sphi 0, %s78
    %s102 = sphi 0, %s104
    %s105 = sphi 0, %s102
    %s106 = sphi 0, %s105
    %s122 = sphi 0, %s106
    %s130 = sphi 0, %s132
    %s133 = sphi 0, %s130
    %s134 = sphi 0, %s133
    %s150 = sphi 0, %s134
    %s158 = sphi 0, %s160
    %s161 = sphi 0, %s158
    %s162 = sphi 0, %s161
    %s178 = sphi 0, %s162
  $region4: #{tpu_custom_call.1} parent=0 // loop_header_branch
    %14 = sbr.rel (%p12) target = $region8
  $region5: #{tpu_custom_call.1} parent=0 // loop_body
    %s16 = ssub.s32 %s11, 1
    %s17 = ssub.s32 %s11, 2
    %s27 = sadd.s32 1, %s20
    %p28 = scmp.ge.s32.totalorder %s27, 1
    %s29 = scalar_select %p28, 0, %s27
    %s30 = sadd.s32 1, %s19
    %s31 = scalar_select %p28, %s30, %s19
    %p32 = scmp.ge.s32.totalorder %s31, 1
    %s33 = scalar_select %p32, 0, %s31
    %s34 = sadd.s32 1, %s18
    %s35 = scalar_select %p32, %s34, %s18
    %p36 = scmp.ge.s32.totalorder %s35, 2
    %s37 = scalar_select %p36, 0, %s35
    %s38 = sadd.s32 %s19, %s20
    %s39 = sadd.s32 %s33, %s29
    %s40 = ssub.s32 %s18, %s37
    %s41 = ssub.s32 %s38, %s39
    %s42 = sor.u32 %s40, %s41
    %p43 = scmp.eq.s32.totalorder %s42, 0
    %s45 = sadd.s32 %s44, 1
    %s46 = scalar_select %p43, %s44, %s45
    %p49 = pneg %p43
    %p50 = scmp.eq.s32.totalorder %s11, 1
    %p51 = por %p49, %p50
    %p52 = scmp.ne.s32.totalorder %s44, %s47
    %p53 = scmp.eq.s32.totalorder %s11, 0
    %p54 = por %p52, %p53
    %p55 = scmp.ne.s32.totalorder %s44, %s47
    %p56 = scmp.eq.s32.totalorder %s16, 1
    %p57 = por %p55, %p56
    %p58 = scmp.ne.s32.totalorder %s47, %s48
    %p59 = scmp.eq.s32.totalorder %s16, 0
    %p60 = por %p58, %p59
    %p61 = scmp.ne.s32.totalorder %s47, %s48
    %p62 = scmp.eq.s32.totalorder %s17, 1
    %p63 = por %p61, %p62
    %p65 = scmp.ne.s32.totalorder %s48, %s64
    %p66 = scmp.eq.s32.totalorder %s17, 0
    %p67 = por %p65, %p66
    %s68 = sadd.s32 %s19, %s20
    %s69 = sadd.s32 %s33, %s29
    %s70 = ssub.s32 %s18, %s37
    %s71 = ssub.s32 %s68, %s69
    %s72 = sor.u32 %s70, %s71
    %p73 = scmp.eq.s32.totalorder %s72, 0
    %s75 = sadd.s32 %s74, 1
    %s76 = scalar_select %p73, %s74, %s75
    %p79 = pneg %p73
    %p80 = scmp.eq.s32.totalorder %s11, 1
    %p81 = por %p79, %p80
    %p82 = scmp.ne.s32.totalorder %s74, %s77
    %p83 = scmp.eq.s32.totalorder %s11, 0
    %p84 = por %p82, %p83
    %p85 = scmp.ne.s32.totalorder %s74, %s77
    %p86 = scmp.eq.s32.totalorder %s16, 1
    %p87 = por %p85, %p86
    %p88 = scmp.ne.s32.totalorder %s77, %s78
    %p89 = scmp.eq.s32.totalorder %s16, 0
    %p90 = por %p88, %p89
    %p91 = scmp.ne.s32.totalorder %s77, %s78
    %p92 = scmp.eq.s32.totalorder %s17, 1
    %p93 = por %p91, %p92
    %p95 = scmp.ne.s32.totalorder %s78, %s94
    %p96 = scmp.eq.s32.totalorder %s17, 0
    %p97 = por %p95, %p96
    %s98 = ssub.s32 %s18, %s37
    %s99 = ssub.s32 %s19, %s33
    %s100 = sor.u32 %s98, %s99
    %p101 = scmp.eq.s32.totalorder %s100, 0
    %s103 = sadd.s32 %s102, 1
    %s104 = scalar_select %p101, %s102, %s103
    %p107 = pneg %p101
    %p108 = scmp.eq.s32.totalorder %s11, 1
    %p109 = por %p107, %p108
    %p110 = scmp.ne.s32.totalorder %s102, %s105
    %p111 = scmp.eq.s32.totalorder %s11, 0
    %p112 = por %p110, %p111
    %p113 = scmp.ne.s32.totalorder %s102, %s105
    %p114 = scmp.eq.s32.totalorder %s16, 1
    %p115 = por %p113, %p114
    %p116 = scmp.ne.s32.totalorder %s105, %s106
    %p117 = scmp.eq.s32.totalorder %s16, 0
    %p118 = por %p116, %p117
    %p119 = scmp.ne.s32.totalorder %s105, %s106
    %p120 = scmp.eq.s32.totalorder %s17, 1
    %p121 = por %p119, %p120
    %p123 = scmp.ne.s32.totalorder %s106, %s122
    %p124 = scmp.eq.s32.totalorder %s17, 0
    %p125 = por %p123, %p124
    %s126 = ssub.s32 %s18, %s37
    %s127 = ssub.s32 %s19, %s33
    %s128 = sor.u32 %s126, %s127
    %p129 = scmp.eq.s32.totalorder %s128, 0
    %s131 = sadd.s32 %s130, 1
    %s132 = scalar_select %p129, %s130, %s131
    %p135 = pneg %p129
    %p136 = scmp.eq.s32.totalorder %s11, 1
    %p137 = por %p135, %p136
    %p138 = scmp.ne.s32.totalorder %s130, %s133
    %p139 = scmp.eq.s32.totalorder %s11, 0
    %p140 = por %p138, %p139
    %p141 = scmp.ne.s32.totalorder %s130, %s133
    %p142 = scmp.eq.s32.totalorder %s16, 1
    %p143 = por %p141, %p142
    %p144 = scmp.ne.s32.totalorder %s133, %s134
    %p145 = scmp.eq.s32.totalorder %s16, 0
    %p146 = por %p144, %p145
    %p147 = scmp.ne.s32.totalorder %s133, %s134
    %p148 = scmp.eq.s32.totalorder %s17, 1
    %p149 = por %p147, %p148
    %p151 = scmp.ne.s32.totalorder %s134, %s150
    %p152 = scmp.eq.s32.totalorder %s17, 0
    %p153 = por %p151, %p152
    %s154 = ssub.s32 %s18, %s37
    %s155 = ssub.s32 %s19, %s33
    %s156 = sor.u32 %s154, %s155
    %p157 = scmp.eq.s32.totalorder %s156, 0
    %s159 = sadd.s32 %s158, 1
    %s160 = scalar_select %p157, %s158, %s159
    %p163 = pneg %p157
    %p164 = scmp.eq.s32.totalorder %s11, 1
    %p165 = por %p163, %p164
    %p166 = scmp.ne.s32.totalorder %s158, %s161
    %p167 = scmp.eq.s32.totalorder %s11, 0
    %p168 = por %p166, %p167
    %p169 = scmp.ne.s32.totalorder %s158, %s161
    %p170 = scmp.eq.s32.totalorder %s16, 1
    %p171 = por %p169, %p170
    %p172 = scmp.ne.s32.totalorder %s161, %s162
    %p173 = scmp.eq.s32.totalorder %s16, 0
    %p174 = por %p172, %p173
    %p175 = scmp.ne.s32.totalorder %s161, %s162
    %p176 = scmp.eq.s32.totalorder %s17, 1
    %p177 = por %p175, %p176
    %p179 = scmp.ne.s32.totalorder %s162, %s178
    %p180 = scmp.eq.s32.totalorder %s17, 0
    %p181 = por %p179, %p180
    %p182 = scmp.le.s32.totalorder 1, %s11
    %p183 = scmp.lt.s32.totalorder %s11, 3
    %p184 = pnand %p182, %p183
    %p185 = pneg %p184
    // Predicated region
    $region9: #{tpu_custom_call.1} parent=5 // pred_check
      _
    $region10: #{tpu_custom_call.1} parent=5 // pred_check_branch
      %187 = sbr.rel (%p184) target = $region12
    $region11: #{tpu_custom_call.1} parent=5 // pred_region
      %s188 = ssub.s32 %s11, 1
    $region12: #{tpu_custom_call.1} parent=5 // pred_fallthru
      _
    %p189 = scmp.lt.s32.totalorder %s11, 2
    // Predicated region
    $region13: #{tpu_custom_call.1} parent=5 // pred_check
      %p190 = pneg %p189
    $region14: #{tpu_custom_call.1} parent=5 // pred_check_branch
      %192 = sbr.rel (%p190) target = $region16
    $region15: #{tpu_custom_call.1} parent=5 // pred_region
      // Predicated region
      $region17: #{tpu_custom_call.1} parent=15 // pred_check
        %p193 = pneg %p54
      $region18: #{tpu_custom_call.1} parent=15 // pred_check_branch
        %195 = sbr.rel (%p193) target = $region20
      $region19: #{tpu_custom_call.1} parent=15 // pred_region
        %s196 = sadd.s32 %s19, %s20
        %s197 = smul.u32 2, %s196
        %p198 = scmp.lt.s32.totalorder %s18, 1
        %s199 = scalar_select %p198, %s18, 1
        %p200 = scmp.lt.s32.totalorder %s197, 1
        %s201 = scalar_select %p200, %s197, 1
        %s202 = smul.addr %s199, 6
        %s203 = sadd.s32 %s201, %s202
        %s204 = smul.addr %s203, 8
        %s205 = scalar_lea.vmem %s0, %s204
        %s206 = sadd.s32 %s19, %s20
        %s207 = smul.u32 2, %s206
      $region20: #{tpu_custom_call.1} parent=15 // pred_fallthru
        _
      // Predicated region
      $region21: #{tpu_custom_call.1} parent=15 // pred_check
        %p208 = pneg %p84
      $region22: #{tpu_custom_call.1} parent=15 // pred_check_branch
        %210 = sbr.rel (%p208) target = $region24
      $region23: #{tpu_custom_call.1} parent=15 // pred_region
        %s211 = sadd.s32 %s19, %s20
        %s212 = smul.u32 2, %s211
        %p213 = scmp.lt.s32.totalorder %s18, 1
        %s214 = scalar_select %p213, %s18, 1
        %p215 = scmp.lt.s32.totalorder %s212, 1
        %s216 = scalar_select %p215, %s212, 1
        %s217 = smul.addr %s214, 2
        %s218 = sadd.s32 %s216, %s217
        %s219 = scalar_lea.vmem %s1, %s218
        %s220 = sadd.s32 %s19, %s20
        %s221 = smul.u32 2, %s220
      $region24: #{tpu_custom_call.1} parent=15 // pred_fallthru
        _
    $region16: #{tpu_custom_call.1} parent=5 // pred_fallthru
      _
    %p222 = scmp.le.s32.totalorder 1, %s11
    %p223 = scmp.lt.s32.totalorder %s11, 3
    %p224 = pnand %p222, %p223
    %p225 = pneg %p224
    // Predicated region
    $region25: #{tpu_custom_call.1} parent=5 // pred_check
      _
    $region26: #{tpu_custom_call.1} parent=5 // pred_check_branch
      %227 = sbr.rel (%p224) target = $region28
    $region27: #{tpu_custom_call.1} parent=5 // pred_region
      %s228 = ssub.s32 %s11, 1
      %s229 = sadd.s32 %s22, %s23
      %s230 = smul.u32 2, %s229
      %p231 = scmp.lt.s32.totalorder %s21, 1
      %s232 = scalar_select %p231, %s21, 1
      %p233 = scmp.lt.s32.totalorder %s230, 1
      %s234 = scalar_select %p233, %s230, 1
      %s235 = smul.addr %s232, 6
      %s236 = sadd.s32 %s234, %s235
      %s237 = smul.addr %s236, 8
      %s238 = scalar_lea.vmem %s0, %s237
      %p239 = pneg %p60
      %p240 = pneg %p57
      %s241 = sadd.s32 %s22, %s23
      %s242 = smul.u32 2, %s241
      %p243 = scmp.lt.s32.totalorder %s21, 1
      %s244 = scalar_select %p243, %s21, 1
      %p245 = scmp.lt.s32.totalorder %s242, 1
      %s246 = scalar_select %p245, %s242, 1
      %s247 = smul.addr %s244, 2
      %s248 = sadd.s32 %s246, %s247
      %s249 = scalar_lea.vmem %s1, %s248
      %p250 = pneg %p90
      %p251 = pneg %p87
      %p252 = pneg %p118
      %p253 = pneg %p115
      %p254 = scmp.lt.s32.totalorder %s21, 1
      %s255 = scalar_select %p254, %s21, 1
      %p256 = scmp.lt.s32.totalorder %s22, 0
      %s257 = scalar_select %p256, %s22, 0
      %s258 = sadd.s32 %s257, %s255
      %s259 = scalar_lea.vmem %s2, %s258
      %p260 = pneg %p146
      %p261 = pneg %p143
      %p262 = scmp.lt.s32.totalorder %s21, 1
      %s263 = scalar_select %p262, %s21, 1
      %p264 = scmp.lt.s32.totalorder %s22, 0
      %s265 = scalar_select %p264, %s22, 0
      %s266 = smul.addr %s265, 3
      %s267 = smul.addr %s263, 3
      %s268 = sadd.s32 %s266, %s267
      %s269 = smul.addr %s268, 8
      %s270 = scalar_lea.vmem %s3, %s269
      %p271 = pneg %p174
      %p272 = pneg %p171
      %p273 = scmp.lt.s32.totalorder %s21, 1
      %s274 = scalar_select %p273, %s21, 1
      %p275 = scmp.lt.s32.totalorder %s22, 0
      %s276 = scalar_select %p275, %s22, 0
      %s277 = smul.addr %s276, 3
      %s278 = smul.addr %s274, 3
      %s279 = sadd.s32 %s277, %s278
      %s280 = smul.addr %s279, 8
      %s281 = scalar_lea.vmem %s4, %s280
      %s282 = sadd.s32 %s22, %s23
      %s283 = smul.u32 2, %s282
      %p284 = scmp.lt.s32.totalorder %s21, 1
      %s285 = scalar_select %p284, %s21, 1
      %p286 = scmp.lt.s32.totalorder %s283, 1
      %s287 = scalar_select %p286, %s283, 1
      %s288 = smul.addr %s285, 6
      %s289 = sadd.s32 %s287, %s288
      %s290 = smul.addr %s289, 8
      %s291 = scalar_lea.vmem %s0, %s290
      %s292 = sadd.s32 %s22, %s23
      %s293 = smul.u32 2, %s292
      %s294 = sadd.s32 %s22, %s23
      %s295 = smul.u32 2, %s294
      %p296 = scmp.lt.s32.totalorder %s21, 1
      %s297 = scalar_select %p296, %s21, 1
      %p298 = scmp.lt.s32.totalorder %s295, 1
      %s299 = scalar_select %p298, %s295, 1
      %s300 = smul.addr %s297, 2
      %s301 = sadd.s32 %s299, %s300
      %s302 = scalar_lea.vmem %s1, %s301
      %s303 = sadd.s32 %s22, %s23
      %s304 = smul.u32 2, %s303
      %p305 = scmp.lt.s32.totalorder %s21, 1
      %s306 = scalar_select %p305, %s21, 1
      %p307 = scmp.lt.s32.totalorder %s22, 0
      %s308 = scalar_select %p307, %s22, 0
      %s309 = sadd.s32 %s308, %s306
      %s310 = scalar_lea.vmem %s2, %s309
      %p311 = scmp.lt.s32.totalorder %s21, 1
      %s312 = scalar_select %p311, %s21, 1
      %p313 = scmp.lt.s32.totalorder %s22, 0
      %s314 = scalar_select %p313, %s22, 0
      %s315 = smul.addr %s314, 3
      %s316 = smul.addr %s312, 3
      %s317 = sadd.s32 %s315, %s316
      %s318 = smul.addr %s317, 8
      %s319 = scalar_lea.vmem %s3, %s318
      %p320 = scmp.lt.s32.totalorder %s21, 1
      %s321 = scalar_select %p320, %s21, 1
      %p322 = scmp.lt.s32.totalorder %s22, 0
      %s323 = scalar_select %p322, %s22, 0
      %s324 = smul.addr %s323, 3
      %s325 = smul.addr %s321, 3
      %s326 = sadd.s32 %s324, %s325
      %s327 = smul.addr %s326, 8
      %s328 = scalar_lea.vmem %s4, %s327
      %p329 = scmp.eq.s32.totalorder %s23, 0
      // Predicated region
      $region29: #{tpu_custom_call.1} parent=27 // pred_check
        %p330 = pneg %p329
      $region30: #{tpu_custom_call.1} parent=27 // pred_check_branch
        %332 = sbr.rel (%p330) target = $region32
      $region31: #{tpu_custom_call.1} parent=27 // pred_region
        %333 = vst [vmem:[#allocation2] sm:$0x1] 0.0
        %334 = vst [vmem:[#allocation3] sm:$0xff] 0.0
        %335 = vst [vmem:[#allocation3 + $0x8] sm:$0xff] 0.0
        %336 = vst [vmem:[#allocation3 + $0x10] sm:$0x3f] 0.0
        %337 = vst [vmem:[#allocation4] sm:$0xff] 0.0
        %338 = vst [vmem:[#allocation4 + $0x8] sm:$0xff] 0.0
        %339 = vst [vmem:[#allocation4 + $0x10] sm:$0x3f] 0.0
        %340 = vst [vmem:[#allocation5] sm:$0xff] 0.0
        %341 = vst [vmem:[#allocation5 + $0x8] sm:$0xff] 0.0
        %342 = vst [vmem:[#allocation5 + $0x10] sm:$0x3f] 0.0
      $region32: #{tpu_custom_call.1} parent=27 // pred_fallthru
        _
      %v343 = vld [vmem:[%s291] sm:$0xff]
      %v344 = vld [vmem:[%s291 + $0x8] sm:$0xff]
      %v345 = vld [vmem:[%s291 + $0x10] sm:$0xff]
      %v346 = vld [vmem:[%s291 + $0x18] sm:$0xff]
      %v347 = vld [vmem:[%s291 + $0x20] sm:$0x3f]
      %v348 = vld [vmem:[%s291 + $0x28] sm:$0x3f]
      %v349 = vld [vmem:[%s302] sm:$0x3]
      %v350 = vlaneseq
      %v351 = vshrl.u32 %v350, 7
      %v352 = vadd.s32 %v351, 8
      %v353 = vadd.s32 %v351, 16
      %v354 = vlaneseq
      %v355 = vshrl.u32 %v354, 7
      %v356 = vsub.s32 0, %v355
      %v357 = vrot.slane %v349, %v356
      %v358 = vlaneseq
      %v359 = vshrl.u32 %v358, 7
      %v360 = vsub.s32 1, %v359
      %v361 = vrot.slane %v349, %v360
      %vm362 = vcmp.eq.s32.totalorder %v351, %v357
      %vm363 = vcmp.eq.s32.totalorder %v351, %v361
      %vm364 = vcmp.eq.s32.totalorder %v352, %v357
      %vm365 = vcmp.eq.s32.totalorder %v352, %v361
      %vm366 = vcmp.eq.s32.totalorder %v353, %v357
      %vm367 = vcmp.eq.s32.totalorder %v353, %v361
      %v368 = vsel %vm362, 1, 0
      %v369 = vsel %vm363, 1, 0
      %v370 = vsel %vm364, 1, 0
      %v371 = vsel %vm365, 1, 0
      %v372 = vsel %vm366, 1, 0
      %v373 = vsel %vm367, 1, 0
      %v374 = vcvt.s32.f32 %v368
      %v375 = vcvt.s32.f32 %v369
      %v376 = vcvt.s32.f32 %v370
      %v377 = vcvt.s32.f32 %v371
      %v378 = vcvt.s32.f32 %v372
      %v379 = vcvt.s32.f32 %v373
      %vm380 = vcmask 1045504
      %v381 = vsel %vm380, %v347, -inf
      %v382 = vmax.f32 %v343, %v381
      %v383 = vmax.f32 %v382, %v345
      %v384 = vrot.slane %v383, 4
      %v385 = vmax.f32 %v383, %v384
      %v386 = vrot.slane %v385, 2
      %v387 = vmax.f32 %v385, %v386
      %v388 = vrot.slane %v387, 1
      %v389 = vmax.f32 %v387, %v388
      %v390 = vsel %vm380, %v348, -inf
      %v391 = vmax.f32 %v344, %v390
      %v392 = vmax.f32 %v391, %v346
      %v393 = vrot.slane %v392, 4
      %v394 = vmax.f32 %v392, %v393
      %v395 = vrot.slane %v394, 2
      %v396 = vmax.f32 %v394, %v395
      %v397 = vrot.slane %v396, 1
      %v398 = vmax.f32 %v396, %v397
      %v399 = vsub.f32 %v343, %v389
      %v400 = vsub.f32 %v344, %v398
      %v401 = vsub.f32 %v345, %v389
      %v402 = vsub.f32 %v346, %v398
      %v403 = vsub.f32 %v347, %v389
      %v404 = vsub.f32 %v348, %v398
      %v405 = vmul.f32 %v399, 1.442695
      %v406 = vpow.pop %v405
      %v407 = vmul.f32 %v400, 1.442695
      %v408 = vpow.pop %v407
      %v409 = vmul.f32 %v401, 1.442695
      %v410 = vpow.pop %v409
      %v411 = vmul.f32 %v402, 1.442695
      %v412 = vpow.pop %v411
      %v413 = vmul.f32 %v403, 1.442695
      %v414 = vpow.pop %v413
      %v415 = vmul.f32 %v404, 1.442695
      %v416 = vpow.pop %v415
      %v417 = vadd.f32 %v406, %v410
      %v418 = vsel %vm380, %v414, 0.0
      %v419 = vadd.f32 %v417, %v418
      %v420 = vrot.slane %v419, 4
      %v421 = vadd.f32 %v419, %v420
      %v422 = vrot.slane %v421, 2
      %v423 = vadd.f32 %v421, %v422
      %v424 = vrot.slane %v423, 1
      %v425 = vadd.f32 %v423, %v424
      %v426 = vadd.f32 %v408, %v412
      %v427 = vsel %vm380, %v416, 0.0
      %v428 = vadd.f32 %v426, %v427
      %v429 = vrot.slane %v428, 4
      %v430 = vadd.f32 %v428, %v429
      %v431 = vrot.slane %v430, 2
      %v432 = vadd.f32 %v430, %v431
      %v433 = vrot.slane %v432, 1
      %v434 = vadd.f32 %v432, %v433
      %v435 = vrcp.pop %v425
      %v436 = vrcp.pop %v434
      %v437 = vmul.f32 %v406, %v435
      %v438 = vmul.f32 %v408, %v436
      %v439 = vmul.f32 %v410, %v435
      %v440 = vmul.f32 %v412, %v436
      %v441 = vmul.f32 %v414, %v435
      %v442 = vmul.f32 %v416, %v436
      %v443 = vlog2.pop %v425
      %v444 = vmul.f32 %v443, 0.6931472
      %v445 = vlog2.pop %v434
      %v446 = vmul.f32 %v445, 0.6931472
      %v447 = vadd.f32 %v389, %v444
      %v448 = vadd.f32 %v398, %v446
      %v449 = vmul.f32 %v343, %v374
      %v450 = vmul.f32 %v344, %v375
      %v451 = vmul.f32 %v345, %v376
      %v452 = vmul.f32 %v346, %v377
      %v453 = vmul.f32 %v347, %v378
      %v454 = vmul.f32 %v348, %v379
      %v455 = vadd.f32 %v449, %v451
      %v456 = vsel %vm380, %v453, 0.0
      %v457 = vadd.f32 %v455, %v456
      %v458 = vrot.slane %v457, 4
      %v459 = vadd.f32 %v457, %v458
      %v460 = vrot.slane %v459, 2
      %v461 = vadd.f32 %v459, %v460
      %v462 = vrot.slane %v461, 1
      %v463 = vadd.f32 %v461, %v462
      %v464 = vadd.f32 %v450, %v452
      %v465 = vsel %vm380, %v454, 0.0
      %v466 = vadd.f32 %v464, %v465
      %v467 = vrot.slane %v466, 4
      %v468 = vadd.f32 %v466, %v467
      %v469 = vrot.slane %v468, 2
      %v470 = vadd.f32 %v468, %v469
      %v471 = vrot.slane %v470, 1
      %v472 = vadd.f32 %v470, %v471
      %v473 = vsub.f32 %v447, %v463
      %v474 = vsub.f32 %v448, %v472
      %v475 = vld [vmem:[#allocation2] sm:$0x1]
      %v476 = vadd.f32 %v473, %v474
      %v477 = vadd.f32 %v475, %v476
      %478 = vst [vmem:[#allocation2] sm:$0x1] %v477
      %v479 = vld [vmem:[#allocation3] sm:$0xff]
      %v480 = vld [vmem:[#allocation3 + $0x8] sm:$0xff]
      %v481 = vld [vmem:[#allocation3 + $0x10] sm:$0x3f]
      %v482 = vmul.f32 %v437, %v374
      %v483 = vmul.f32 %v438, %v375
      %v484 = vmul.f32 %v439, %v376
      %v485 = vmul.f32 %v440, %v377
      %v486 = vmul.f32 %v441, %v378
      %v487 = vmul.f32 %v442, %v379
      %v488 = vadd.f32 %v482, %v483
      %v489 = vadd.f32 %v484, %v485
      %v490 = vadd.f32 %v486, %v487
      %v491 = vadd.f32 %v479, %v488
      %v492 = vadd.f32 %v480, %v489
      %v493 = vadd.f32 %v481, %v490
      %494 = vst [vmem:[#allocation3] sm:$0xff] %v491
      %495 = vst [vmem:[#allocation3 + $0x8] sm:$0xff] %v492
      %496 = vst [vmem:[#allocation3 + $0x10] sm:$0x3f] %v493
      %v497 = vld [vmem:[#allocation4] sm:$0xff]
      %v498 = vld [vmem:[#allocation4 + $0x8] sm:$0xff]
      %v499 = vld [vmem:[#allocation4 + $0x10] sm:$0x3f]
      %v500 = vadd.f32 %v437, %v438
      %v501 = vadd.f32 %v439, %v440
      %v502 = vadd.f32 %v441, %v442
      %v503 = vadd.f32 %v497, %v500
      %v504 = vadd.f32 %v498, %v501
      %v505 = vadd.f32 %v499, %v502
      %506 = vst [vmem:[#allocation4] sm:$0xff] %v503
      %507 = vst [vmem:[#allocation4 + $0x8] sm:$0xff] %v504
      %508 = vst [vmem:[#allocation4 + $0x10] sm:$0x3f] %v505
      %v509 = vld [vmem:[#allocation5] sm:$0xff]
      %v510 = vld [vmem:[#allocation5 + $0x8] sm:$0xff]
      %v511 = vld [vmem:[#allocation5 + $0x10] sm:$0x3f]
      %v512 = vadd.f32 %v374, %v375
      %v513 = vadd.f32 %v376, %v377
      %v514 = vadd.f32 %v378, %v379
      %v515 = vadd.f32 %v509, %v512
      %v516 = vadd.f32 %v510, %v513
      %v517 = vadd.f32 %v511, %v514
      %518 = vst [vmem:[#allocation5] sm:$0xff] %v515
      %519 = vst [vmem:[#allocation5 + $0x8] sm:$0xff] %v516
      %520 = vst [vmem:[#allocation5 + $0x10] sm:$0x3f] %v517
      // Predicated region
      $region33: #{tpu_custom_call.1} parent=27 // pred_check
        %p521 = pneg %p329
      $region34: #{tpu_custom_call.1} parent=27 // pred_check_branch
        %523 = sbr.rel (%p521) target = $region36
      $region35: #{tpu_custom_call.1} parent=27 // pred_region
        %v524 = vld [vmem:[#allocation2] sm:$0x1]
        %vm525 = vcmask 1040384
        %v526 = vsel %vm525, %v524, 0.0
        %527 = vadd.xlane.f32.xlu0 %v526
        %v528 = vpop.xlane.xlu0 %527
        %vm529 = vcmask 0
        %530 = vst.msk [vmem:[%s310] sm:$0x1] %vm529, %v528
        %v531 = vld [vmem:[#allocation3] sm:$0xff]
        %v532 = vld [vmem:[#allocation3 + $0x8] sm:$0xff]
        %v533 = vld [vmem:[#allocation3 + $0x10] sm:$0x3f]
        %534 = vadd.xlane.f32.xlu0 %v531
        %v535 = vpop.xlane.xlu0 %534
        %536 = vadd.xlane.f32.xlu0 %v532
        %v537 = vpop.xlane.xlu0 %536
        %v538 = vsel %vm380, %v533, 0.0
        %539 = vadd.xlane.f32.xlu0 %v538
        %v540 = vpop.xlane.xlu0 %539
        %vm541 = vcmask 7168
        %542 = vst.msk [vmem:[%s319] sm:$0xff] %vm541, %v535
        %543 = vst.msk [vmem:[%s319 + $0x8] sm:$0xff] %vm541, %v537
        %vm544 = vcmask 5120
        %545 = vst.msk [vmem:[%s319 + $0x10] sm:$0x3f] %vm544, %v540
        %v546 = vld [vmem:[#allocation4] sm:$0xff]
        %v547 = vld [vmem:[#allocation4 + $0x8] sm:$0xff]
        %v548 = vld [vmem:[#allocation4 + $0x10] sm:$0x3f]
        %v549 = vld [vmem:[#allocation5] sm:$0xff]
        %v550 = vld [vmem:[#allocation5 + $0x8] sm:$0xff]
        %v551 = vld [vmem:[#allocation5 + $0x10] sm:$0x3f]
        %v552 = vadd.f32 %v546, %v549
        %v553 = vadd.f32 %v547, %v550
        %v554 = vadd.f32 %v548, %v551
        %555 = vadd.xlane.f32.xlu0 %v552
        %v556 = vpop.xlane.xlu0 %555
        %557 = vadd.xlane.f32.xlu0 %v553
        %v558 = vpop.xlane.xlu0 %557
        %v559 = vsel %vm380, %v554, 0.0
        %560 = vadd.xlane.f32.xlu0 %v559
        %v561 = vpop.xlane.xlu0 %560
        %562 = vst.msk [vmem:[%s328] sm:$0xff] %vm541, %v556
        %563 = vst.msk [vmem:[%s328 + $0x8] sm:$0xff] %vm541, %v558
        %564 = vst.msk [vmem:[%s328 + $0x10] sm:$0x3f] %vm544, %v561
      $region36: #{tpu_custom_call.1} parent=27 // pred_fallthru
        _
      %p565 = scmp.lt.s32.totalorder %s21, 1
      %s566 = scalar_select %p565, %s21, 1
      %p567 = scmp.lt.s32.totalorder %s22, 0
      %s568 = scalar_select %p567, %s22, 0
      %s569 = sadd.s32 %s568, %s566
      %s570 = scalar_lea.vmem %s2, %s569
      %p571 = scmp.lt.s32.totalorder %s21, 1
      %s572 = scalar_select %p571, %s21, 1
      %p573 = scmp.lt.s32.totalorder %s22, 0
      %s574 = scalar_select %p573, %s22, 0
      %s575 = smul.addr %s574, 3
      %s576 = smul.addr %s572, 3
      %s577 = sadd.s32 %s575, %s576
      %s578 = smul.addr %s577, 8
      %s579 = scalar_lea.vmem %s3, %s578
      %p580 = scmp.lt.s32.totalorder %s21, 1
      %s581 = scalar_select %p580, %s21, 1
      %p582 = scmp.lt.s32.totalorder %s22, 0
      %s583 = scalar_select %p582, %s22, 0
      %s584 = smul.addr %s583, 3
      %s585 = smul.addr %s581, 3
      %s586 = sadd.s32 %s584, %s585
      %s587 = smul.addr %s586, 8
      %s588 = scalar_lea.vmem %s4, %s587
      // Predicated region
      $region37: #{tpu_custom_call.1} parent=27 // pred_check
        %p589 = pneg %p115
      $region38: #{tpu_custom_call.1} parent=27 // pred_check_branch
        %591 = sbr.rel (%p589) target = $region40
      $region39: #{tpu_custom_call.1} parent=27 // pred_region
        _
      $region40: #{tpu_custom_call.1} parent=27 // pred_fallthru
        _
      // Predicated region
      $region41: #{tpu_custom_call.1} parent=27 // pred_check
        %p592 = pneg %p143
      $region42: #{tpu_custom_call.1} parent=27 // pred_check_branch
        %594 = sbr.rel (%p592) target = $region44
      $region43: #{tpu_custom_call.1} parent=27 // pred_region
        _
      $region44: #{tpu_custom_call.1} parent=27 // pred_fallthru
        _
      // Predicated region
      $region45: #{tpu_custom_call.1} parent=27 // pred_check
        %p595 = pneg %p171
      $region46: #{tpu_custom_call.1} parent=27 // pred_check_branch
        %597 = sbr.rel (%p595) target = $region48
      $region47: #{tpu_custom_call.1} parent=27 // pred_region
        _
      $region48: #{tpu_custom_call.1} parent=27 // pred_fallthru
        _
    $region28: #{tpu_custom_call.1} parent=5 // pred_fallthru
      _
    %p598 = scmp.le.s32.totalorder 2, %s11
    // Predicated region
    $region49: #{tpu_custom_call.1} parent=5 // pred_check
      %p599 = pneg %p598
    $region50: #{tpu_custom_call.1} parent=5 // pred_check_branch
      %601 = sbr.rel (%p599) target = $region52
    $region51: #{tpu_custom_call.1} parent=5 // pred_region
      %s602 = ssub.s32 %s11, 2
      // Predicated region
      $region53: #{tpu_custom_call.1} parent=51 // pred_check
        %p603 = pneg %p121
      $region54: #{tpu_custom_call.1} parent=51 // pred_check_branch
        %605 = sbr.rel (%p603) target = $region56
      $region55: #{tpu_custom_call.1} parent=51 // pred_region
        %p606 = scmp.lt.s32.totalorder %s24, 1
        %s607 = scalar_select %p606, %s24, 1
        %p608 = scmp.lt.s32.totalorder %s25, 0
        %s609 = scalar_select %p608, %s25, 0
        %s610 = sadd.s32 %s609, %s607
        %s611 = scalar_lea.vmem %s2, %s610
      $region56: #{tpu_custom_call.1} parent=51 // pred_fallthru
        _
      // Predicated region
      $region57: #{tpu_custom_call.1} parent=51 // pred_check
        %p612 = pneg %p149
      $region58: #{tpu_custom_call.1} parent=51 // pred_check_branch
        %614 = sbr.rel (%p612) target = $region60
      $region59: #{tpu_custom_call.1} parent=51 // pred_region
        %p615 = scmp.lt.s32.totalorder %s24, 1
        %s616 = scalar_select %p615, %s24, 1
        %p617 = scmp.lt.s32.totalorder %s25, 0
        %s618 = scalar_select %p617, %s25, 0
        %s619 = smul.addr %s618, 3
        %s620 = smul.addr %s616, 3
        %s621 = sadd.s32 %s619, %s620
        %s622 = smul.addr %s621, 8
        %s623 = scalar_lea.vmem %s3, %s622
      $region60: #{tpu_custom_call.1} parent=51 // pred_fallthru
        _
      // Predicated region
      $region61: #{tpu_custom_call.1} parent=51 // pred_check
        %p624 = pneg %p177
      $region62: #{tpu_custom_call.1} parent=51 // pred_check_branch
        %626 = sbr.rel (%p624) target = $region64
      $region63: #{tpu_custom_call.1} parent=51 // pred_region
        %p627 = scmp.lt.s32.totalorder %s24, 1
        %s628 = scalar_select %p627, %s24, 1
        %p629 = scmp.lt.s32.totalorder %s25, 0
        %s630 = scalar_select %p629, %s25, 0
        %s631 = smul.addr %s630, 3
        %s632 = smul.addr %s628, 3
        %s633 = sadd.s32 %s631, %s632
        %s634 = smul.addr %s633, 8
        %s635 = scalar_lea.vmem %s4, %s634
      $region64: #{tpu_custom_call.1} parent=51 // pred_fallthru
        _
    $region52: #{tpu_custom_call.1} parent=5 // pred_fallthru
      _
  $region6: #{tpu_custom_call.1} parent=0 // loop_footer
    %s15 = sadd.s32 1, %s11
  $region7: #{tpu_custom_call.1} parent=0 // loop_footer_branch
    %10 = sbr.rel target = $region3
  $region8: #{tpu_custom_call.1} parent=0 // loop_exit
    _

</llo_original>
